<compile_context>
chip_gen: v6e
topology: v6e:2x2x1
jax: 0.10.0
libtpu: 0.0.40
codegen_flags: <defaults>
</compile_context>

<pallas_src>
import math

import jax
import jax.numpy as jnp
from jax import lax
from jax.experimental import pallas as pl
from jax.experimental.pallas import tpu as pltpu


def _attn_with_fit_kernel(f1_ref, fitq_ref, arow_ref, brow_ref, xt_ref, attn_ref, o_ref):
    """One (query-row-tile, batch-tile) grid step.

    f1_ref   : SMEM (1,) f32        softmax(F)[1]
    fitq_ref : VMEM (Bt, tq, 1) f32 fitness of the query rows (sublane/column form)
    arow_ref : VMEM (Bt, 1, N) f32  alpha*fit + beta   (key / lane form)
    brow_ref : VMEM (Bt, 1, N) f32  gamma*fit + delta  (key / lane form)
    xt_ref   : VMEM (Bt, D, N) bf16 population, pre-transposed
    attn_ref : VMEM (1, tq, N) bf16 f0 * softmax(attn) row tile (batch-invariant)
    o_ref    : VMEM (Bt, D, tq) f32 transposed output tile (lanes = query rows)
    """
    fit_q = fitq_ref[...]                                     # (Bt, tq, 1)
    a_row = arow_ref[...]                                     # (Bt, 1, N)
    b_row = brow_ref[...]                                     # (Bt, 1, N)

    # Rank-structured scaled q.k^T (fitness channel == 1) — pure VPU outer product:
    #   scores[b,i,j] = fit_i*(alpha*fit_j + beta) + (gamma*fit_j + delta)
    scores = fit_q * a_row + b_row                            # (Bt, tq, N) f32

    # Row softmax in f32; exact normalization folded into the combine weight.
    s_max = jnp.max(scores, axis=-1, keepdims=True)           # (Bt, tq, 1)  XLU
    p = jnp.exp(scores - s_max)                               # (Bt, tq, N)  EUP
    l = jnp.sum(p, axis=-1, keepdims=True)                    # (Bt, tq, 1)  XLU
    w2 = f1_ref[0] / l                                        # exact divide (per review)

    # Fused combine with the pre-scaled, pre-softmaxed attention table; cast to bf16
    # only at the MXU boundary (softmax math stays f32).
    combined = (attn_ref[...].astype(jnp.float32) + w2 * p).astype(jnp.bfloat16)

    # out_T[b,d,q] = sum_m x_T[b,d,m] * combined[b,q,m]  — single MXU pass, contraction
    # over the key axis, output lanes = the query-row tile (lane-dense store).
    out_t = lax.dot_general(
        xt_ref[...], combined,
        dimension_numbers=(((2,), (2,)), ((0,), (0,))),
        preferred_element_type=jnp.float32)                   # (Bt, D, tq) f32
    o_ref[...] = out_t.astype(o_ref.dtype)


def _chip_info():
    """(physical VMEM bytes, TensorCores per chip) with conservative fallbacks."""
    vmem_cap = 64 * 1024 * 1024                    # v7x floor — safe on every generation
    try:
        vmem_cap = int(pltpu.get_tpu_info().vmem_capacity_bytes)
    except Exception:
        pass
    n_cores = 1
    try:
        kind = jax.devices()[0].device_kind.lower()
        if "v7" in kind or "7x" in kind:
            n_cores = 2                            # v7x: 2 TensorCores per chip
    except Exception:
        pass
    return vmem_cap, n_cores


def _derive_tiles(B, N, D, vmem_cap, n_cores):
    """Pick (block_b, tq, n_q, n_b, vmem_limit) from a byte budget, per chip generation."""
    # ~96 MiB on 128 MiB parts (v5e/v6e), ~48 MiB on v7x's 64 MiB.
    budget = min(int(vmem_cap * 3 // 4), 96 * 1024 * 1024)
    tq_target = 128 if vmem_cap <= 64 * 1024 * 1024 else 256
    tq = N if N <= tq_target else tq_target

    const_bytes = tq * N * 2                       # single-buffered attn tile (bf16)
    per_b = (2 * D * N * 2                         # x_T bf16, double-buffered
             + 2 * 2 * N * 4                       # a_row + b_row f32, double-buffered
             + 2 * tq * 4                          # query-fitness column tile, double-buffered
             + 2 * D * tq * 4                      # output tile f32, double-buffered
             + 3 * tq * N * 4)                     # live f32 intermediates (scores/p/combined)
    block_b = int(max(1, min(B, (budget - const_bytes) // max(per_b, 1))))
    while B % block_b:                             # keep every batch block full
        block_b -= 1

    n_q, n_b = pl.cdiv(N, tq), B // block_b
    # Multi-TC parts (v7x): keep >= 2 parallel grid steps so both cores get work.
    if n_cores > 1 and n_q * n_b < 2 and B > 1:
        block_b = max(1, block_b // 2)
        while B % block_b:
            block_b -= 1
        n_b = B // block_b
    return block_b, tq, n_q, n_b, budget


def attn_with_fit(x, fitx, attn, wq, bq, wk, bk, F):
    """Pallas forward of AttnWithFit. x: (B,N,D), fitx: (B,N,1), attn: (1,N,N),
    wq/wk: (H,1), bq/bk: (H,), F: (2,). Returns (B,N,D), matching the PyTorch module."""
    B, N, D = x.shape
    _, _, C = fitx.shape
    assert C == 1, "AttnWithFit uses Linear(1, hiddenDim); fitness channel must be 1"

    # ---- batch-invariant precompute (plain XLA, once per call) --------------------
    scale = jnp.float32(D ** -0.5)                 # x.shape[-1] ** -0.5, as in torch
    wqv = wq.reshape(-1).astype(jnp.float32)
    wkv = wk.reshape(-1).astype(jnp.float32)
    bqv = bq.astype(jnp.float32)
    bkv = bk.astype(jnp.float32)
    alpha = scale * jnp.dot(wqv, wkv)
    beta = scale * jnp.dot(wqv, bkv)
    gamma = scale * jnp.dot(bqv, wkv)
    delta = scale * jnp.dot(bqv, bkv)

    f_sm = jax.nn.softmax(F.astype(jnp.float32), axis=-1)                       # (2,)
    attn_f0 = (f_sm[0] * jax.nn.softmax(attn.astype(jnp.float32), axis=-1)
               ).astype(jnp.bfloat16)                                           # (1,N,N) bf16
    f1 = f_sm[1].reshape(1)                                                     # (1,) f32 -> SMEM

    fit = fitx[..., 0].astype(jnp.float32)         # (B, N)
    fit_q = fit[:, :, None]                        # (B, N, 1)  query / sublane form
    fit_r = fit[:, None, :]                        # (B, 1, N)  key / lane form
    a_row = alpha * fit_r + beta                   # (B, 1, N)
    b_row = gamma * fit_r + delta                  # (B, 1, N)
    x_t = jnp.swapaxes(x, 1, 2).astype(jnp.bfloat16)   # (B, D, N) bf16 MXU operand

    # ---- per-chip tiling / VMEM budget --------------------------------------------
    vmem_cap, n_cores = _chip_info()
    block_b, tq, n_q, n_b, vmem_limit = _derive_tiles(B, N, D, vmem_cap, n_cores)

    # Grid: (query-row tiles, batch tiles). Rows are the outer axis so the constant
    # attention tile never changes within the inner sweep; both axes are parallel.
    out_t = pl.pallas_call(
        _attn_with_fit_kernel,
        out_shape=jax.ShapeDtypeStruct((B, D, N), jnp.float32),
        grid=(n_q, n_b),
        in_specs=[
            pl.BlockSpec(memory_space=pltpu.MemorySpace.SMEM),                  # f1 scalar
            # NOTE: 1-lane query-fitness block — tiny; kept for simplicity (the review
            # allows it; the lane-dense alternative is an in-kernel lane->sublane splat).
            pl.BlockSpec((block_b, tq, 1), lambda qi, bi: (bi, qi, 0)),         # fit_q
            pl.BlockSpec((block_b, 1, N), lambda qi, bi: (bi, 0, 0)),           # a_row
            pl.BlockSpec((block_b, 1, N), lambda qi, bi: (bi, 0, 0)),           # b_row
            pl.BlockSpec((block_b, D, N), lambda qi, bi: (bi, 0, 0)),           # x_T (bf16)
            pl.BlockSpec((1, tq, N), lambda qi, bi: (0, qi, 0),
                         pipeline_mode=pl.Buffered(1)),                         # f0*softmax(attn)
        ],
        out_specs=pl.BlockSpec((block_b, D, tq), lambda qi, bi: (bi, 0, qi)),
        compiler_params=pltpu.CompilerParams(
            dimension_semantics=("parallel", "parallel"),
            vmem_limit_bytes=vmem_limit,
        ),
    )(f1, fit_q, a_row, b_row, x_t, attn_f0)

    # Kernel writes the lane-dense (B, D, N) layout; present the module's (B, N, D).
    return jnp.swapaxes(out_t, 1, 2).astype(x.dtype)


def _reference(x, fitx, attn, wq, bq, wk, bk, F):
    # Pure-JAX f32 replica of the PyTorch forward, for verification.
    q = jnp.einsum('bnc,hc->bnh', fitx, wq) + bq            # (B, N, H)
    k = jnp.einsum('bnc,hc->bnh', fitx, wk) + bk            # (B, N, H)
    scores = jnp.einsum('bnh,bmh->bnm', q, k) * x.shape[-1] ** (-0.5)
    fitattn = jax.nn.softmax(scores, axis=-1)               # (B, N, N)
    attn_sm = jax.nn.softmax(attn, axis=-1)                 # (1, N, N)
    y1 = jnp.einsum('onm,bmd->bnd', attn_sm, x)             # broadcast over batch
    y2 = jnp.einsum('bnm,bmd->bnd', fitattn, x)
    f_sm = jax.nn.softmax(F, axis=-1)
    return y1 * f_sm[0] + y2 * f_sm[1]


if __name__ == "__main__":
    B, N, H, D, C = 4, 8, 32, 16, 1   # batch, popSize, hiddenDim, solution dim, fitness chans

    key = jax.random.PRNGKey(0)
    ks = jax.random.split(key, 8)

    # deterministic synthetic parameters (shapes per module __init__)
    attn = jax.random.normal(ks[0], (1, N, N), dtype=jnp.float32)              # nn.Parameter randn
    bound = 1.0 / math.sqrt(C)
    wq = jax.random.uniform(ks[1], (H, C), jnp.float32, -bound, bound)         # Linear(1, H).weight
    bq = jax.random.uniform(ks[2], (H,), jnp.float32, -bound, bound)           # Linear(1, H).bias
    wk = jax.random.uniform(ks[3], (H, C), jnp.float32, -bound, bound)
    bk = jax.random.uniform(ks[4], (H,), jnp.float32, -bound, bound)
    F = jax.random.normal(ks[5], (2,), dtype=jnp.float32)                      # nn.Parameter randn

    # example inputs
    x = jax.random.normal(ks[6], (B, N, D), dtype=jnp.float32)
    fitx = jax.random.normal(ks[7], (B, N, C), dtype=jnp.float32)

    y = attn_with_fit(x, fitx, attn, wq, bq, wk, bk, F)
    y = jax.block_until_ready(y)

    y_ref = _reference(x, fitx, attn, wq, bq, wk, bk, F)
    # The softmax normalization is exact f32 now (no approx reciprocal); the remaining
    # tolerance reflects only the intentional bf16 MXU operands (x, attn table, combined).
    if not jnp.allclose(y, y_ref, atol=3e-2, rtol=3e-2):
        max_err = float(jnp.max(jnp.abs(y - y_ref)))
        raise AssertionError(
            f"Pallas kernel output mismatch vs. reference (max abs err={max_err:.4g})")

    print("KERNEL_OK")
</pallas_src>

<mosaic_0001>
module attributes {stable_mosaic.version = 11 : i64} {
  func.func @_attn_with_fit_kernel(%arg0: i32, %arg1: i32, %arg2: memref<1xf32, #tpu.memory_space<smem>>, %arg3: memref<4x8x1xf32, #tpu.memory_space<vmem>>, %arg4: memref<4x1x8xf32, #tpu.memory_space<vmem>>, %arg5: memref<4x1x8xf32, #tpu.memory_space<vmem>>, %arg6: memref<4x16x8xbf16, #tpu.memory_space<vmem>>, %arg7: memref<1x8x8xbf16, #tpu.memory_space<vmem>>, %arg8: memref<4x16x8xf32, #tpu.memory_space<vmem>>) attributes {dimension_semantics = [#tpu.dimension_semantics<parallel>, #tpu.dimension_semantics<parallel>], iteration_bounds = array<i64: 1, 1>, scalar_prefetch = 0 : i64, scratch_operands = 0 : i64, tpu.core_type = #tpu.core_type<tc>, window_params = [{transform_indices = @transform_0, window_bounds = array<i64: 1>}, {transform_indices = @transform_1, window_bounds = array<i64: 4, 8, 1>}, {transform_indices = @transform_2, window_bounds = array<i64: 4, 1, 8>}, {transform_indices = @transform_3, window_bounds = array<i64: 4, 1, 8>}, {transform_indices = @transform_4, window_bounds = array<i64: 4, 16, 8>}, {pipeline_mode = #tpu.pipeline_mode<synchronous>, transform_indices = @transform_5, window_bounds = array<i64: 1, 8, 8>}, {transform_indices = @transform_6, window_bounds = array<i64: 4, 16, 8>}]} {
    %c0 = arith.constant 0 : index
    %c0_0 = arith.constant 0 : index
    %c0_1 = arith.constant 0 : index
    %0 = vector.load %arg3[%c0, %c0_0, %c0_1] : memref<4x8x1xf32, #tpu.memory_space<vmem>>, vector<4x8x1xf32>
    %c0_2 = arith.constant 0 : index
    %c0_3 = arith.constant 0 : index
    %c0_4 = arith.constant 0 : index
    %1 = vector.load %arg4[%c0_2, %c0_3, %c0_4] : memref<4x1x8xf32, #tpu.memory_space<vmem>>, vector<4x1x8xf32>
    %c0_5 = arith.constant 0 : index
    %c0_6 = arith.constant 0 : index
    %c0_7 = arith.constant 0 : index
    %2 = vector.load %arg5[%c0_5, %c0_6, %c0_7] : memref<4x1x8xf32, #tpu.memory_space<vmem>>, vector<4x1x8xf32>
    %3 = vector.broadcast %0 : vector<4x8x1xf32> to vector<4x8x8xf32>
    %4 = vector.broadcast %1 : vector<4x1x8xf32> to vector<4x8x8xf32>
    %5 = arith.mulf %3, %4 : vector<4x8x8xf32>
    %6 = vector.broadcast %2 : vector<4x1x8xf32> to vector<4x8x8xf32>
    %7 = arith.addf %5, %6 : vector<4x8x8xf32>
    %cst = arith.constant dense<0xFF800000> : vector<4x8xf32>
    %8 = vector.multi_reduction <maximumf>, %7, %cst [2] : vector<4x8x8xf32> to vector<4x8xf32>
    %9 = vector.shape_cast %8 : vector<4x8xf32> to vector<4x8x1xf32>
    %10 = vector.broadcast %9 : vector<4x8x1xf32> to vector<4x8x8xf32>
    %11 = arith.subf %7, %10 : vector<4x8x8xf32>
    %12 = math.exp %11 : vector<4x8x8xf32>
    %cst_8 = arith.constant dense<0.000000e+00> : vector<4x8xf32>
    %13 = vector.multi_reduction <add>, %12, %cst_8 [2] : vector<4x8x8xf32> to vector<4x8xf32>
    %14 = vector.shape_cast %13 : vector<4x8xf32> to vector<4x8x1xf32>
    %c0_9 = arith.constant 0 : index
    %15 = memref.load %arg2[%c0_9] : memref<1xf32, #tpu.memory_space<smem>>
    %16 = vector.broadcast %15 : f32 to vector<4x8x1xf32>
    %17 = arith.divf %16, %14 : vector<4x8x1xf32>
    %c0_10 = arith.constant 0 : index
    %c0_11 = arith.constant 0 : index
    %c0_12 = arith.constant 0 : index
    %18 = vector.load %arg7[%c0_10, %c0_11, %c0_12] : memref<1x8x8xbf16, #tpu.memory_space<vmem>>, vector<1x8x8xbf16>
    %19 = arith.extf %18 : vector<1x8x8xbf16> to vector<1x8x8xf32>
    %20 = vector.broadcast %17 : vector<4x8x1xf32> to vector<4x8x8xf32>
    %21 = arith.mulf %20, %12 : vector<4x8x8xf32>
    %22 = vector.broadcast %19 : vector<1x8x8xf32> to vector<4x8x8xf32>
    %23 = arith.addf %22, %21 : vector<4x8x8xf32>
    %24 = arith.truncf %23 : vector<4x8x8xf32> to vector<4x8x8xbf16>
    %c0_13 = arith.constant 0 : index
    %c0_14 = arith.constant 0 : index
    %c0_15 = arith.constant 0 : index
    %25 = vector.load %arg6[%c0_13, %c0_14, %c0_15] : memref<4x16x8xbf16, #tpu.memory_space<vmem>>, vector<4x16x8xbf16>
    %cst_16 = arith.constant dense<0.000000e+00> : vector<4x16x8xf32>
    %26 = tpu.matmul %25, %24, %cst_16 {dimension_numbers = #tpu.dot_dimension_numbers<[2], [2], [1], [1], [0, 0, 0, 1, 1, 1], [0], [0]>} : vector<4x16x8xbf16>, vector<4x8x8xbf16>, vector<4x16x8xf32> -> vector<4x16x8xf32>
    %c0_17 = arith.constant 0 : index
    %c0_18 = arith.constant 0 : index
    %c0_19 = arith.constant 0 : index
    %27 = vector.load %arg8[%c0_17, %c0_18, %c0_19] : memref<4x16x8xf32, #tpu.memory_space<vmem>>, vector<4x16x8xf32>
    tpu.vector_store %arg8[%c0_17, %c0_18, %c0_19], %26 {strides = array<i32>} : memref<4x16x8xf32, #tpu.memory_space<vmem>>, vector<4x16x8xf32>,
    return
  }
  func.func @transform_0(%arg0: i32, %arg1: i32) -> i32 {
    %c0_i32 = arith.constant 0 : i32
    %c0_i32_0 = arith.constant 0 : i32
    return %c0_i32 : i32
  }
  func.func @transform_1(%arg0: i32, %arg1: i32) -> (i32, i32, i32) {
    %c0_i32 = arith.constant 0 : i32
    %c0_i32_0 = arith.constant 0 : i32
    return %arg1, %arg0, %c0_i32 : i32, i32, i32
  }
  func.func @transform_2(%arg0: i32, %arg1: i32) -> (i32, i32, i32) {
    %c0_i32 = arith.constant 0 : i32
    %c0_i32_0 = arith.constant 0 : i32
    %c0_i32_1 = arith.constant 0 : i32
    return %arg1, %c0_i32, %c0_i32_0 : i32, i32, i32
  }
  func.func @transform_3(%arg0: i32, %arg1: i32) -> (i32, i32, i32) {
    %c0_i32 = arith.constant 0 : i32
    %c0_i32_0 = arith.constant 0 : i32
    %c0_i32_1 = arith.constant 0 : i32
    return %arg1, %c0_i32, %c0_i32_0 : i32, i32, i32
  }
  func.func @transform_4(%arg0: i32, %arg1: i32) -> (i32, i32, i32) {
    %c0_i32 = arith.constant 0 : i32
    %c0_i32_0 = arith.constant 0 : i32
    %c0_i32_1 = arith.constant 0 : i32
    return %arg1, %c0_i32, %c0_i32_0 : i32, i32, i32
  }
  func.func @transform_5(%arg0: i32, %arg1: i32) -> (i32, i32, i32) {
    %c0_i32 = arith.constant 0 : i32
    %c0_i32_0 = arith.constant 0 : i32
    %c0_i32_1 = arith.constant 0 : i32
    return %c0_i32, %arg0, %c0_i32_0 : i32, i32, i32
  }
  func.func @transform_6(%arg0: i32, %arg1: i32) -> (i32, i32, i32) {
    %c0_i32 = arith.constant 0 : i32
    %c0_i32_0 = arith.constant 0 : i32
    return %arg1, %c0_i32, %arg0 : i32, i32, i32
  }
}

</mosaic_0001>

<llo_original>
// kernel: tpu_custom_call.1
$region0: #{tpu_custom_call.1}
  #allocation0 [shape = 'u32[]', space=smem, size = 0x4, offset = 0x4, fixed_abs, tag = 'smem constant byte address 0x4 - core index']
  #allocation1 [shape = 'u32[144,128]{1,0:T(1,128)}', space=vmem, size = 0x12000, scoped, tag = 'internal scratch']
  #allocation2 [shape = 'f32[1]{0:T(128)S(6)}', space=smem, size = 0x200, scoped, tag = 'scoped memory for tpu_custom_call.1']
  %s0 = inlined_call_operand.<no memory space> [shape: f32[1], index: 0, kind: input, shape index: {}]
  %s1 = inlined_call_operand.vmem [shape: f32[4,8,1], index: 1, kind: input, shape index: {}]
  %s2 = inlined_call_operand.vmem [shape: f32[4,1,8], index: 2, kind: input, shape index: {}]
  %s3 = inlined_call_operand.vmem [shape: f32[4,1,8], index: 3, kind: input, shape index: {}]
  %s4 = inlined_call_operand.vmem [shape: bf16[4,16,8], index: 4, kind: input, shape index: {}]
  %s5 = inlined_call_operand.vmem [shape: bf16[1,8,8], index: 5, kind: input, shape index: {}]
  %s6 = inlined_call_operand.vmem [shape: f32[4,16,8], index: 6, kind: output, shape index: {}]
  %s7 = sld [smem:[#allocation0]]
  $region34: #{tpu_custom_call.1} parent=0
    _
  %s9 = ssub.s32 1, %s7
  %s10 = scalar_select 0, %s9, %s7
  %11 = sst [smem:[#allocation2]] %s0
  // Predicated region
  $region2: #{tpu_custom_call.1} parent=0 // pred_check
    _
  $region3: #{tpu_custom_call.1} parent=0 // pred_check_branch
    %13 = sbr.rel (0) target = $region5
  $region4: #{tpu_custom_call.1} parent=0 // pred_region
    _
  $region5: #{tpu_custom_call.1} parent=0 // pred_fallthru
    _
  // Predicated region
  $region6: #{tpu_custom_call.1} parent=0 // pred_check
    _
  $region7: #{tpu_custom_call.1} parent=0 // pred_check_branch
    %15 = sbr.rel (0) target = $region9
  $region8: #{tpu_custom_call.1} parent=0 // pred_region
    _
  $region9: #{tpu_custom_call.1} parent=0 // pred_fallthru
    _
  // Predicated region
  $region10: #{tpu_custom_call.1} parent=0 // pred_check
    _
  $region11: #{tpu_custom_call.1} parent=0 // pred_check_branch
    %17 = sbr.rel (0) target = $region13
  $region12: #{tpu_custom_call.1} parent=0 // pred_region
    _
  $region13: #{tpu_custom_call.1} parent=0 // pred_fallthru
    _
  // Predicated region
  $region14: #{tpu_custom_call.1} parent=0 // pred_check
    _
  $region15: #{tpu_custom_call.1} parent=0 // pred_check_branch
    %19 = sbr.rel (0) target = $region17
  $region16: #{tpu_custom_call.1} parent=0 // pred_region
    _
  $region17: #{tpu_custom_call.1} parent=0 // pred_fallthru
    _
  // Predicated region
  $region18: #{tpu_custom_call.1} parent=0 // pred_check
    _
  $region19: #{tpu_custom_call.1} parent=0 // pred_check_branch
    %21 = sbr.rel (0) target = $region21
  $region20: #{tpu_custom_call.1} parent=0 // pred_region
    _
  $region21: #{tpu_custom_call.1} parent=0 // pred_fallthru
    _
  // Predicated region
  $region22: #{tpu_custom_call.1} parent=0 // pred_check
    _
  $region23: #{tpu_custom_call.1} parent=0 // pred_check_branch
    %23 = sbr.rel (0) target = $region25
  $region24: #{tpu_custom_call.1} parent=0 // pred_region
    _
  $region25: #{tpu_custom_call.1} parent=0 // pred_fallthru
    _
  %v25 = vld [vmem:[%s1] sm:$0xff]
  %v26 = vld [vmem:[%s1 + $0x8] sm:$0xff]
  %v27 = vld [vmem:[%s1 + $0x10] sm:$0xff]
  %v28 = vld [vmem:[%s1 + $0x18] sm:$0xff]
  %v29 = vld [vmem:[%s2] sm:$0x1]
  %v30 = vld [vmem:[%s2 + $0x1] sm:$0x1]
  %v31 = vld [vmem:[%s2 + $0x2] sm:$0x1]
  %v32 = vld [vmem:[%s2 + $0x3] sm:$0x1]
  %v33 = vld [vmem:[%s3] sm:$0x1]
  %v34 = vld [vmem:[%s3 + $0x1] sm:$0x1]
  %v35 = vld [vmem:[%s3 + $0x2] sm:$0x1]
  %v36 = vld [vmem:[%s3 + $0x3] sm:$0x1]
  %38 = vset.pattern.permute.xlu0 0
  %39 = vperm.xlu0 %38, %v25
  %v40 = vpop.permute.xlu0 %39
  %43 = vset.pattern.permute.xlu0 0
  %44 = vperm.xlu0 %43, %v26
  %v45 = vpop.permute.xlu0 %44
  %48 = vset.pattern.permute.xlu0 0
  %49 = vperm.xlu0 %48, %v27
  %v50 = vpop.permute.xlu0 %49
  %53 = vset.pattern.permute.xlu0 0
  %54 = vperm.xlu0 %53, %v28
  %v55 = vpop.permute.xlu0 %54
  %v61 = vlaneseq
  %v62 = vshrl.u32 %v61, 7
  %v63 = vsub.s32 0, %v62
  %v64 = vrot.slane %v29, %v63
  %v65 = vlaneseq
  %v66 = vshrl.u32 %v65, 7
  %v67 = vsub.s32 0, %v66
  %v68 = vrot.slane %v30, %v67
  %v69 = vlaneseq
  %v70 = vshrl.u32 %v69, 7
  %v71 = vsub.s32 0, %v70
  %v72 = vrot.slane %v31, %v71
  %v73 = vlaneseq
  %v74 = vshrl.u32 %v73, 7
  %v75 = vsub.s32 0, %v74
  %v76 = vrot.slane %v32, %v75
  %v81 = vmul.f32 %v40, %v64
  %v82 = vmul.f32 %v45, %v68
  %v83 = vmul.f32 %v50, %v72
  %v84 = vmul.f32 %v55, %v76
  %v89 = vlaneseq
  %v90 = vshrl.u32 %v89, 7
  %v91 = vsub.s32 0, %v90
  %v92 = vrot.slane %v33, %v91
  %v93 = vlaneseq
  %v94 = vshrl.u32 %v93, 7
  %v95 = vsub.s32 0, %v94
  %v96 = vrot.slane %v34, %v95
  %v97 = vlaneseq
  %v98 = vshrl.u32 %v97, 7
  %v99 = vsub.s32 0, %v98
  %v100 = vrot.slane %v35, %v99
  %v101 = vlaneseq
  %v102 = vshrl.u32 %v101, 7
  %v103 = vsub.s32 0, %v102
  %v104 = vrot.slane %v36, %v103
  %v109 = vadd.f32 %v81, %v92
  %v110 = vadd.f32 %v82, %v96
  %v111 = vadd.f32 %v83, %v100
  %v112 = vadd.f32 %v84, %v104
  %vm113 = vcmask 64512
  %v114 = vsel %vm113, %v109, -inf
  %115 = vmax.xlane.f32.xlu0 %v114
  %v116 = vpop.xlane.xlu0 %115
  %v117 = vsel %vm113, %v110, -inf
  %118 = vmax.xlane.f32.xlu0 %v117
  %v119 = vpop.xlane.xlu0 %118
  %v120 = vsel %vm113, %v111, -inf
  %121 = vmax.xlane.f32.xlu0 %v120
  %v122 = vpop.xlane.xlu0 %121
  %v123 = vsel %vm113, %v112, -inf
  %124 = vmax.xlane.f32.xlu0 %v123
  %v125 = vpop.xlane.xlu0 %124
  %v126 = vsub.f32 %v109, %v116
  %v127 = vsub.f32 %v110, %v119
  %v128 = vsub.f32 %v111, %v122
  %v129 = vsub.f32 %v112, %v125
  %v130 = vmul.f32 %v126, 1.442695
  %v131 = vpow.pop %v130
  %v132 = vmul.f32 %v127, 1.442695
  %v133 = vpow.pop %v132
  %v134 = vmul.f32 %v128, 1.442695
  %v135 = vpow.pop %v134
  %v136 = vmul.f32 %v129, 1.442695
  %v137 = vpow.pop %v136
  %v138 = vsel %vm113, %v131, 0.0
  %139 = vadd.xlane.f32.xlu0 %v138
  %v140 = vpop.xlane.xlu0 %139
  %v141 = vsel %vm113, %v133, 0.0
  %142 = vadd.xlane.f32.xlu0 %v141
  %v143 = vpop.xlane.xlu0 %142
  %v144 = vsel %vm113, %v135, 0.0
  %145 = vadd.xlane.f32.xlu0 %v144
  %v146 = vpop.xlane.xlu0 %145
  %v147 = vsel %vm113, %v137, 0.0
  %148 = vadd.xlane.f32.xlu0 %v147
  %v149 = vpop.xlane.xlu0 %148
  %s150 = sld [smem:[#allocation2]]
  %v151 = vstv %s150
  %v152 = vrcp.pop %v140
  %v153 = vmul.f32 %v151, %v152
  %v154 = vrcp.pop %v143
  %v155 = vmul.f32 %v151, %v154
  %v156 = vrcp.pop %v146
  %v157 = vmul.f32 %v151, %v156
  %v158 = vrcp.pop %v149
  %v159 = vmul.f32 %v151, %v158
  %v160 = vld [vmem:[%s5] sm:$0xf]
  %v161 = vunpack.c.l.bf16 %v160
  %v162 = vmul.f32 %v153, %v131
  %v163 = vmul.f32 %v155, %v133
  %v164 = vmul.f32 %v157, %v135
  %v165 = vmul.f32 %v159, %v137
  %v166 = vadd.f32 %v161, %v162
  %v167 = vadd.f32 %v161, %v163
  %v168 = vadd.f32 %v161, %v164
  %v169 = vadd.f32 %v161, %v165
  %v170 = vpack.c.bf16 %v166, %v166
  %v171 = vpack.c.bf16 %v167, %v167
  %v172 = vpack.c.bf16 %v168, %v168
  %v173 = vpack.c.bf16 %v169, %v169
  %v174 = vld [vmem:[%s4] sm:$0xf]
  %v175 = vld [vmem:[%s4 + $0x4] sm:$0xf]
  %v176 = vld [vmem:[%s4 + $0x8] sm:$0xf]
  %v177 = vld [vmem:[%s4 + $0xc] sm:$0xf]
  %v178 = vld [vmem:[%s4 + $0x10] sm:$0xf]
  %v179 = vld [vmem:[%s4 + $0x14] sm:$0xf]
  %v180 = vld [vmem:[%s4 + $0x18] sm:$0xf]
  %v181 = vld [vmem:[%s4 + $0x1c] sm:$0xf]
  %v184 = vunpack.c.l.b16 %v174
  %v185 = vunpack.c.l.b16 %v175
  %v186 = vpack.c.b16 %v185, %v184
  %v188 = vsel %vm113, %v186, 0
  %v191 = vsel %vm113, %v170, 0
  %193 = vmatprep.subr.bf16.mxu0 0
  %194 = vmatpush1.bf16.xpose.msra.mxu0 0
  %195 = vmatprep.subr.bf16.mxu0 0
  %196 = vmatpush1.bf16.xpose.msra.mxu0 0
  %197 = vmatprep.subr.bf16.mxu0 0
  %198 = vmatpush1.bf16.xpose.msra.mxu0 0
  %199 = vmatprep.subr.bf16.mxu0 0
  %200 = vmatpush1.bf16.xpose.msra.mxu0 0
  %201 = vmatprep.subr.bf16.mxu0 0
  %202 = vmatpush1.bf16.xpose.msra.mxu0 0
  %203 = vmatprep.subr.bf16.mxu0 0
  %204 = vmatpush1.bf16.xpose.msra.mxu0 0
  %205 = vmatprep.subr.bf16.mxu0 0
  %206 = vmatpush1.bf16.xpose.msra.mxu0 0
  %207 = vmatprep.subr.bf16.mxu0 0
  %208 = vmatpush1.bf16.xpose.msra.mxu0 %v191
  %209 = vmatprep.subr.bf16.mxu0 0
  %210 = vmatpush2.bf16.xpose.msra.mxu0 0
  %211 = vmatprep.subr.bf16.mxu0 0
  %212 = vmatpush2.bf16.xpose.msra.mxu0 0
  %213 = vmatprep.subr.bf16.mxu0 0
  %214 = vmatpush2.bf16.xpose.msra.mxu0 0
  %215 = vmatprep.subr.bf16.mxu0 0
  %216 = vmatpush2.bf16.xpose.msra.mxu0 0
  %217 = vmatprep.subr.bf16.mxu0 0
  %218 = vmatpush2.bf16.xpose.msra.mxu0 0
  %219 = vmatprep.subr.bf16.mxu0 0
  %220 = vmatpush2.bf16.xpose.msra.mxu0 0
  %221 = vmatprep.subr.bf16.mxu0 0
  %222 = vmatpush2.bf16.xpose.msra.mxu0 0
  %223 = vmatprep.subr.bf16.mxu0 0
  %224 = vmatpush2.bf16.xpose.msra.mxu0 0
  %225 = vmatprep.mubr.bf16.mxu0 0
  %226 = vmatmul.mubr.bf16.gmra.mxu0 %v188
  %v227 = vpop.f32.mrf.mxu0
  %v228 = vadd.f32 0.0, %v227
  %v229 = vpop.f32.mrf.mxu0
  %v230 = vpop.f32.mrf.mxu0
  %v231 = vadd.f32 0.0, %v230
  %v232 = vpop.f32.mrf.mxu0
  %233 = vdwg.mxu0
  %v236 = vunpack.c.l.b16 %v176
  %v237 = vunpack.c.l.b16 %v177
  %v238 = vpack.c.b16 %v237, %v236
  %v240 = vsel %vm113, %v238, 0
  %v243 = vsel %vm113, %v171, 0
  %245 = vmatprep.subr.bf16.mxu0 0
  %246 = vmatpush1.bf16.xpose.msra.mxu0 0
  %247 = vmatprep.subr.bf16.mxu0 0
  %248 = vmatpush1.bf16.xpose.msra.mxu0 0
  %249 = vmatprep.subr.bf16.mxu0 0
  %250 = vmatpush1.bf16.xpose.msra.mxu0 0
  %251 = vmatprep.subr.bf16.mxu0 0
  %252 = vmatpush1.bf16.xpose.msra.mxu0 0
  %253 = vmatprep.subr.bf16.mxu0 0
  %254 = vmatpush1.bf16.xpose.msra.mxu0 0
  %255 = vmatprep.subr.bf16.mxu0 0
  %256 = vmatpush1.bf16.xpose.msra.mxu0 0
  %257 = vmatprep.subr.bf16.mxu0 0
  %258 = vmatpush1.bf16.xpose.msra.mxu0 0
  %259 = vmatprep.subr.bf16.mxu0 0
  %260 = vmatpush1.bf16.xpose.msra.mxu0 %v243
  %261 = vmatprep.subr.bf16.mxu0 0
  %262 = vmatpush2.bf16.xpose.msra.mxu0 0
  %263 = vmatprep.subr.bf16.mxu0 0
  %264 = vmatpush2.bf16.xpose.msra.mxu0 0
  %265 = vmatprep.subr.bf16.mxu0 0
  %266 = vmatpush2.bf16.xpose.msra.mxu0 0
  %267 = vmatprep.subr.bf16.mxu0 0
  %268 = vmatpush2.bf16.xpose.msra.mxu0 0
  %269 = vmatprep.subr.bf16.mxu0 0
  %270 = vmatpush2.bf16.xpose.msra.mxu0 0
  %271 = vmatprep.subr.bf16.mxu0 0
  %272 = vmatpush2.bf16.xpose.msra.mxu0 0
  %273 = vmatprep.subr.bf16.mxu0 0
  %274 = vmatpush2.bf16.xpose.msra.mxu0 0
  %275 = vmatprep.subr.bf16.mxu0 0
  %276 = vmatpush2.bf16.xpose.msra.mxu0 0
  %277 = vmatprep.mubr.bf16.mxu0 0
  %278 = vmatmul.mubr.bf16.gmra.mxu0 %v240
  %v279 = vpop.f32.mrf.mxu0
  %v280 = vadd.f32 0.0, %v279
  %v281 = vpop.f32.mrf.mxu0
  %v282 = vpop.f32.mrf.mxu0
  %v283 = vadd.f32 0.0, %v282
  %v284 = vpop.f32.mrf.mxu0
  %285 = vdwg.mxu0
  %v288 = vunpack.c.l.b16 %v178
  %v289 = vunpack.c.l.b16 %v179
  %v290 = vpack.c.b16 %v289, %v288
  %v292 = vsel %vm113, %v290, 0
  %v295 = vsel %vm113, %v172, 0
  %297 = vmatprep.subr.bf16.mxu0 0
  %298 = vmatpush1.bf16.xpose.msra.mxu0 0
  %299 = vmatprep.subr.bf16.mxu0 0
  %300 = vmatpush1.bf16.xpose.msra.mxu0 0
  %301 = vmatprep.subr.bf16.mxu0 0
  %302 = vmatpush1.bf16.xpose.msra.mxu0 0
  %303 = vmatprep.subr.bf16.mxu0 0
  %304 = vmatpush1.bf16.xpose.msra.mxu0 0
  %305 = vmatprep.subr.bf16.mxu0 0
  %306 = vmatpush1.bf16.xpose.msra.mxu0 0
  %307 = vmatprep.subr.bf16.mxu0 0
  %308 = vmatpush1.bf16.xpose.msra.mxu0 0
  %309 = vmatprep.subr.bf16.mxu0 0
  %310 = vmatpush1.bf16.xpose.msra.mxu0 0
  %311 = vmatprep.subr.bf16.mxu0 0
  %312 = vmatpush1.bf16.xpose.msra.mxu0 %v295
  %313 = vmatprep.subr.bf16.mxu0 0
  %314 = vmatpush2.bf16.xpose.msra.mxu0 0
  %315 = vmatprep.subr.bf16.mxu0 0
  %316 = vmatpush2.bf16.xpose.msra.mxu0 0
  %317 = vmatprep.subr.bf16.mxu0 0
  %318 = vmatpush2.bf16.xpose.msra.mxu0 0
  %319 = vmatprep.subr.bf16.mxu0 0
  %320 = vmatpush2.bf16.xpose.msra.mxu0 0
  %321 = vmatprep.subr.bf16.mxu0 0
  %322 = vmatpush2.bf16.xpose.msra.mxu0 0
  %323 = vmatprep.subr.bf16.mxu0 0
  %324 = vmatpush2.bf16.xpose.msra.mxu0 0
  %325 = vmatprep.subr.bf16.mxu0 0
  %326 = vmatpush2.bf16.xpose.msra.mxu0 0
  %327 = vmatprep.subr.bf16.mxu0 0
  %328 = vmatpush2.bf16.xpose.msra.mxu0 0
  %329 = vmatprep.mubr.bf16.mxu0 0
  %330 = vmatmul.mubr.bf16.gmra.mxu0 %v292
  %v331 = vpop.f32.mrf.mxu0
  %v332 = vadd.f32 0.0, %v331
  %v333 = vpop.f32.mrf.mxu0
  %v334 = vpop.f32.mrf.mxu0
  %v335 = vadd.f32 0.0, %v334
  %v336 = vpop.f32.mrf.mxu0
  %337 = vdwg.mxu0
  %v340 = vunpack.c.l.b16 %v180
  %v341 = vunpack.c.l.b16 %v181
  %v342 = vpack.c.b16 %v341, %v340
  %v344 = vsel %vm113, %v342, 0
  %v347 = vsel %vm113, %v173, 0
  %349 = vmatprep.subr.bf16.mxu0 0
  %350 = vmatpush1.bf16.xpose.msra.mxu0 0
  %351 = vmatprep.subr.bf16.mxu0 0
  %352 = vmatpush1.bf16.xpose.msra.mxu0 0
  %353 = vmatprep.subr.bf16.mxu0 0
  %354 = vmatpush1.bf16.xpose.msra.mxu0 0
  %355 = vmatprep.subr.bf16.mxu0 0
  %356 = vmatpush1.bf16.xpose.msra.mxu0 0
  %357 = vmatprep.subr.bf16.mxu0 0
  %358 = vmatpush1.bf16.xpose.msra.mxu0 0
  %359 = vmatprep.subr.bf16.mxu0 0
  %360 = vmatpush1.bf16.xpose.msra.mxu0 0
  %361 = vmatprep.subr.bf16.mxu0 0
  %362 = vmatpush1.bf16.xpose.msra.mxu0 0
  %363 = vmatprep.subr.bf16.mxu0 0
  %364 = vmatpush1.bf16.xpose.msra.mxu0 %v347
  %365 = vmatprep.subr.bf16.mxu0 0
  %366 = vmatpush2.bf16.xpose.msra.mxu0 0
  %367 = vmatprep.subr.bf16.mxu0 0
  %368 = vmatpush2.bf16.xpose.msra.mxu0 0
  %369 = vmatprep.subr.bf16.mxu0 0
  %370 = vmatpush2.bf16.xpose.msra.mxu0 0
  %371 = vmatprep.subr.bf16.mxu0 0
  %372 = vmatpush2.bf16.xpose.msra.mxu0 0
  %373 = vmatprep.subr.bf16.mxu0 0
  %374 = vmatpush2.bf16.xpose.msra.mxu0 0
  %375 = vmatprep.subr.bf16.mxu0 0
  %376 = vmatpush2.bf16.xpose.msra.mxu0 0
  %377 = vmatprep.subr.bf16.mxu0 0
  %378 = vmatpush2.bf16.xpose.msra.mxu0 0
  %379 = vmatprep.subr.bf16.mxu0 0
  %380 = vmatpush2.bf16.xpose.msra.mxu0 0
  %381 = vmatprep.mubr.bf16.mxu0 0
  %382 = vmatmul.mubr.bf16.gmra.mxu0 %v344
  %v383 = vpop.f32.mrf.mxu0
  %v384 = vadd.f32 0.0, %v383
  %v385 = vpop.f32.mrf.mxu0
  %v386 = vpop.f32.mrf.mxu0
  %v387 = vadd.f32 0.0, %v386
  %v388 = vpop.f32.mrf.mxu0
  %389 = vdwg.mxu0
  %390 = vst.msk [vmem:[%s6] sm:$0xff] %vm113, %v228
  %391 = vst.msk [vmem:[%s6 + $0x8] sm:$0xff] %vm113, %v231
  %392 = vst.msk [vmem:[%s6 + $0x10] sm:$0xff] %vm113, %v280
  %393 = vst.msk [vmem:[%s6 + $0x18] sm:$0xff] %vm113, %v283
  %394 = vst.msk [vmem:[%s6 + $0x20] sm:$0xff] %vm113, %v332
  %395 = vst.msk [vmem:[%s6 + $0x28] sm:$0xff] %vm113, %v335
  %396 = vst.msk [vmem:[%s6 + $0x30] sm:$0xff] %vm113, %v384
  %397 = vst.msk [vmem:[%s6 + $0x38] sm:$0xff] %vm113, %v387
  // Predicated region
  $region26: #{tpu_custom_call.1} parent=0 // pred_check
    _
  $region27: #{tpu_custom_call.1} parent=0 // pred_check_branch
    %399 = sbr.rel (0) target = $region29
  $region28: #{tpu_custom_call.1} parent=0 // pred_region
    _
  $region29: #{tpu_custom_call.1} parent=0 // pred_fallthru
    _
  // Predicated region
  $region30: #{tpu_custom_call.1} parent=0 // pred_check
    _
  $region31: #{tpu_custom_call.1} parent=0 // pred_check_branch
    %401 = sbr.rel (0) target = $region33
  $region32: #{tpu_custom_call.1} parent=0 // pred_region
    _
  $region33: #{tpu_custom_call.1} parent=0 // pred_fallthru
    _

</llo_original>
